<compile_context>
chip_gen: v7x
topology: tpu7x:2x2x1
jax: 0.10.0
libtpu: 0.0.40
codegen_flags: <defaults>
</compile_context>

<pallas_src>
import functools

import numpy as np
import jax
import jax.numpy as jnp
from jax.experimental import pallas as pl
from jax.experimental.pallas import tpu as pltpu

_LANES = 128
_SUBLANES = 8


def _round_up(x, m):
    return ((x + m - 1) // m) * m


def _mrr_count_kernel(pos_ref, neg_ref, out_ref, acc_ref, *, last_valid):
    """Accumulate per-row counts of (neg > pos) over the negative axis.

    Grid: (row tiles [parallel], negative column tiles [arbitrary/reduction]).
    acc_ref is a (p_tile, 128) lane-wide partial-count accumulator: the steady
    state only does compare + VPU adds (each column tile is folded into 128
    lanes via 128-aligned slices); the XLU cross-lane reduce and the exact
    reciprocal happen once, on the last reduction step.  `last_valid` is the
    static number of valid lanes in the last (possibly ragged) column tile --
    the HBM slab is unpadded, so the ragged tail is masked here.
    """
    j = pl.program_id(1)
    nj = pl.num_programs(1)
    n_tile = neg_ref.shape[1]

    @pl.when(j == 0)
    def _init():
        acc_ref[...] = jnp.zeros_like(acc_ref)

    def accumulate(mask_ragged_lanes):
        pos = pos_ref[...]                       # (p_tile, 1)      f32
        neg = neg_ref[...]                       # (p_tile, n_tile) f32
        gt = neg > pos                           # lane-broadcast compare
        if mask_ragged_lanes:
            lane = jax.lax.broadcasted_iota(jnp.int32, neg.shape, 1)
            gt = jnp.logical_and(gt, lane < last_valid)
        gt = gt.astype(jnp.float32)
        partial = gt[:, :_LANES]
        for g in range(1, n_tile // _LANES):     # 128-aligned slices: VPU adds only
            partial = partial + gt[:, g * _LANES:(g + 1) * _LANES]
        acc_ref[...] += partial

    if last_valid < n_tile:
        # Only the single ragged last column tile needs lane masking; keep the
        # steady-state (full tiles) path free of the iota/compare.
        @pl.when(j == nj - 1)
        def _ragged():
            accumulate(True)

        @pl.when(j < nj - 1)
        def _full():
            accumulate(False)
    else:
        accumulate(False)

    @pl.when(j == nj - 1)
    def _finalize():
        cnt = jnp.sum(acc_ref[...], axis=1, keepdims=True)  # XLU reduce, once/row tile
        out_ref[...] = 1.0 / (cnt + 1.0)                     # exact reciprocal rank


def mrr(num, predict_val, num_pos, index, *, block_target_bytes=4 << 20,
        p_tile=None, n_tile=None, fast_path_elems=4096):
    """Pallas equivalent of MRR.forward(num, predict_val, num_pos, index).

    `num` and `num_pos` are static Python ints (they define shapes).
    Returns (mrr_scalar, sample_mrr) with sample_mrr of shape (num_pos,).

    Assumes distinct scores (the reference breaks ties with a random shuffle,
    so exact agreement is only defined for distinct scores anyway); then
    rank_i = 1 + #{negatives of i with score > positive i's score}.
    """
    predict_val = jnp.asarray(predict_val, jnp.float32).reshape(-1)
    index = jnp.asarray(index)

    # Stable ascending argsort of `index`, then gather directly into the
    # (num_pos, 1) positive column and the (num_pos, num) negative slab --
    # no intermediate reordered vector and no padded copy is materialized.
    # TODO(synk): argsort/gather has no clean Pallas TPU equivalent; done in JAX.
    order = jnp.argsort(index, stable=True)
    pos = jnp.take(predict_val, order[:num_pos], axis=0).reshape(num_pos, 1)
    neg = jnp.take(
        predict_val,
        order[num_pos:num_pos + num_pos * num].reshape(num_pos, num),
        axis=0)

    if num_pos * num <= fast_path_elems:
        # Tiny problems: a fused XLA broadcast-compare-reduce beats the
        # pallas_call launch/grid overhead and avoids all tiling concerns.
        cnt = jnp.sum((neg > pos).astype(jnp.float32), axis=1, keepdims=True)
        recip = 1.0 / (cnt + 1.0)
    else:
        # Row tile: multiple of 8, capped at 128, shrunk so the "parallel" row
        # axis has >=4 tiles when num_pos allows (keeps both v7x TCs busy).
        if p_tile is None:
            p_tile = min(128, max(_SUBLANES,
                                  _round_up(int(pl.cdiv(num_pos, 4)), _SUBLANES)))
        p_tile = int(min(p_tile, _round_up(num_pos, _SUBLANES)))

        # Column tile: multiple of 128, sized so the negative block is about
        # block_target_bytes (default 4 MiB: double-buffered it still fits
        # v5e's 16 MiB scoped-VMEM default; raise to 8 MiB on v6e/v7x).
        if n_tile is None:
            lane_budget = max(
                _LANES, (block_target_bytes // (4 * p_tile)) // _LANES * _LANES)
            n_tile = min(_round_up(num, _LANES), lane_budget, 8192)
        n_tile = int(n_tile)

        grid = (int(pl.cdiv(num_pos, p_tile)), int(pl.cdiv(num, n_tile)))
        last_valid = int(num - (grid[1] - 1) * n_tile)  # valid lanes, last col tile

        kernel = functools.partial(_mrr_count_kernel, last_valid=last_valid)

        cost = pl.CostEstimate(
            flops=4 * num_pos * num,
            transcendentals=0,
            bytes_accessed=4 * num_pos * num + 8 * num_pos * (1 + grid[1]),
        )

        recip = pl.pallas_call(
            kernel,
            out_shape=jax.ShapeDtypeStruct((num_pos, 1), jnp.float32),
            grid_spec=pltpu.PrefetchScalarGridSpec(
                num_scalar_prefetch=0,
                grid=grid,
                in_specs=[
                    pl.BlockSpec((p_tile, 1), lambda i, j: (i, 0)),
                    pl.BlockSpec((p_tile, n_tile), lambda i, j: (i, j)),
                ],
                out_specs=pl.BlockSpec((p_tile, 1), lambda i, j: (i, 0)),
                scratch_shapes=[pltpu.VMEM((p_tile, _LANES), jnp.float32)],
            ),
            compiler_params=pltpu.CompilerParams(
                dimension_semantics=("parallel", "arbitrary")),
            cost_estimate=cost,
        )(pos, neg)

    sample_mrr = recip[:num_pos, 0]
    mrr_val = jnp.mean(sample_mrr)
    return mrr_val, sample_mrr


def mrr_ref(num, predict_val, num_pos, index):
    """Faithful numpy port of the PyTorch reference (for self-checking)."""
    predict_val = np.asarray(predict_val, np.float64).reshape(-1)
    index = np.asarray(index)
    index_tuple = sorted(enumerate(index.tolist()), reverse=False,
                         key=lambda p: p[1])
    index_list = [p[0] for p in index_tuple]
    pv = predict_val[index_list]
    sample_mrr = []
    rank_sum = 0.0
    for i in range(num_pos):
        neg_scores = pv[num_pos + i * num: num_pos + (i + 1) * num]
        scores = neg_scores.tolist() + [pv[i]]
        random_num = np.random.choice(range(len(scores)), len(scores),
                                      replace=False)
        pos_index = int(np.where(random_num == num)[0][0])
        scores = np.array(scores)[random_num]
        scores_tuple = sorted(enumerate(scores), reverse=True,
                              key=lambda s: s[1])
        scores_index = [s[0] for s in scores_tuple]
        rank = scores_index.index(pos_index) + 1
        sample_mrr.append(1.0 / rank)
        rank_sum += 1.0 / rank
    return rank_sum / num_pos, sample_mrr


if __name__ == "__main__":
    key = jax.random.PRNGKey(0)
    k1, k2, k3, k4 = jax.random.split(key, 4)

    # ---- Pallas path (small, but multi-tile with a ragged last column tile) --
    num_pos = 24          # positives  -> 3 row tiles of 8 with the overrides
    num = 300             # negatives  -> 3 col tiles of 128, last has 44 valid
    total = num_pos + num_pos * num

    # Distinct scores by construction, so the reference's random tie-shuffle
    # is irrelevant and the comparison is exact.
    predict_val = (jax.random.permutation(k1, total).astype(jnp.float32)
                   + 1.0) / total
    index = jax.random.permutation(k2, total)

    # Force small tiles so the multi-tile accumulation + ragged-edge masking
    # paths of the kernel are exercised at this demo size.
    mrr_val, sample_mrr = mrr(num, predict_val, num_pos, index,
                              p_tile=8, n_tile=128)
    mrr_val = jax.block_until_ready(mrr_val)
    sample_mrr = jax.block_until_ready(sample_mrr)

    np.random.seed(0)
    ref_mrr, ref_sample = mrr_ref(num, np.asarray(predict_val), num_pos,
                                  np.asarray(index))
    assert np.allclose(np.asarray(sample_mrr), np.asarray(ref_sample),
                       rtol=1e-6, atol=1e-6), (sample_mrr, ref_sample)
    assert np.allclose(float(mrr_val), ref_mrr, rtol=1e-6, atol=1e-6), (
        mrr_val, ref_mrr)

    # Same data through the auto-tiled Pallas path (default block sizing).
    mrr_val2, sample_mrr2 = mrr(num, predict_val, num_pos, index)
    mrr_val2 = jax.block_until_ready(mrr_val2)
    sample_mrr2 = jax.block_until_ready(sample_mrr2)
    assert np.allclose(np.asarray(sample_mrr2), np.asarray(ref_sample),
                       rtol=1e-6, atol=1e-6)
    assert np.allclose(float(mrr_val2), ref_mrr, rtol=1e-6, atol=1e-6)

    # ---- Tiny-problem fast path (pure jnp, no pallas_call) ------------------
    num_pos_s, num_s = 4, 16
    total_s = num_pos_s + num_pos_s * num_s
    pv_s = (jax.random.permutation(k3, total_s).astype(jnp.float32)
            + 1.0) / total_s
    idx_s = jax.random.permutation(k4, total_s)
    mrr_s, sample_s = mrr(num_s, pv_s, num_pos_s, idx_s)
    mrr_s = jax.block_until_ready(mrr_s)
    np.random.seed(0)
    ref_mrr_s, ref_sample_s = mrr_ref(num_s, np.asarray(pv_s), num_pos_s,
                                      np.asarray(idx_s))
    assert np.allclose(np.asarray(sample_s), np.asarray(ref_sample_s),
                       rtol=1e-6, atol=1e-6)
    assert np.allclose(float(mrr_s), ref_mrr_s, rtol=1e-6, atol=1e-6)

    print("KERNEL_OK")
</pallas_src>

<mosaic_0001>
module attributes {stable_mosaic.version = 11 : i64} {
  func.func @_mrr_count_kernel(%arg0: i32, %arg1: i32, %arg2: memref<8x1xf32, #tpu.memory_space<vmem>>, %arg3: memref<8x128xf32, #tpu.memory_space<vmem>>, %arg4: memref<8x1xf32, #tpu.memory_space<vmem>>, %arg5: memref<8x128xf32, #tpu.memory_space<vmem>>) attributes {dimension_semantics = [#tpu.dimension_semantics<parallel>, #tpu.dimension_semantics<arbitrary>], iteration_bounds = array<i64: 3, 3>, scalar_prefetch = 0 : i64, scratch_operands = 1 : i64, tpu.core_type = #tpu.core_type<tc>, window_params = [{transform_indices = @transform_0, window_bounds = array<i64: 8, 1>}, {transform_indices = @transform_1, window_bounds = array<i64: 8, 128>}, {transform_indices = @transform_2, window_bounds = array<i64: 8, 1>}]} {
    %c0_i32 = arith.constant 0 : i32
    %0 = arith.cmpi eq, %arg1, %c0_i32 : i32
    %1 = arith.extui %0 : i1 to i32
    %c0_i32_0 = arith.constant 0 : i32
    %2 = arith.cmpi ne, %1, %c0_i32_0 : i32
    scf.if %2 {
      %cst = arith.constant 0.000000e+00 : f32
      %12 = vector.broadcast %cst : f32 to vector<8x128xf32>
      %c0 = arith.constant 0 : index
      %c0_6 = arith.constant 0 : index
      %13 = vector.load %arg5[%c0, %c0_6] : memref<8x128xf32, #tpu.memory_space<vmem>>, vector<8x128xf32>
      tpu.vector_store %arg5[%c0, %c0_6], %12 {strides = array<i32>} : memref<8x128xf32, #tpu.memory_space<vmem>>, vector<8x128xf32>,
    } else {
    }
    %c2_i32 = arith.constant 2 : i32
    %3 = arith.cmpi eq, %arg1, %c2_i32 : i32
    %4 = arith.extui %3 : i1 to i32
    %c0_i32_1 = arith.constant 0 : i32
    %5 = arith.cmpi ne, %4, %c0_i32_1 : i32
    scf.if %5 {
      %c0 = arith.constant 0 : index
      %c0_6 = arith.constant 0 : index
      %12 = vector.load %arg2[%c0, %c0_6] : memref<8x1xf32, #tpu.memory_space<vmem>>, vector<8x1xf32>
      %c0_7 = arith.constant 0 : index
      %c0_8 = arith.constant 0 : index
      %13 = vector.load %arg3[%c0_7, %c0_8] : memref<8x128xf32, #tpu.memory_space<vmem>>, vector<8x128xf32>
      %14 = vector.broadcast %12 : vector<8x1xf32> to vector<8x128xf32>
      %15 = arith.cmpf ogt, %13, %14 : vector<8x128xf32>
      %16 = tpu.iota {dimensions = array<i32: 1>} : vector<8x128xi32>
      %c44_i32 = arith.constant 44 : i32
      %17 = vector.broadcast %c44_i32 : i32 to vector<8x128xi32>
      %18 = arith.cmpi slt, %16, %17 : vector<8x128xi32>
      %19 = arith.andi %15, %18 : vector<8x128xi1>
      %20 = arith.extui %19 : vector<8x128xi1> to vector<8x128xi32>
      %21 = arith.sitofp %20 : vector<8x128xi32> to vector<8x128xf32>
      %c0_9 = arith.constant 0 : index
      %c0_10 = arith.constant 0 : index
      %22 = vector.load %arg5[%c0_9, %c0_10] : memref<8x128xf32, #tpu.memory_space<vmem>>, vector<8x128xf32>
      %23 = arith.addf %22, %21 : vector<8x128xf32>
      %c0_11 = arith.constant 0 : index
      %c0_12 = arith.constant 0 : index
      %24 = vector.load %arg5[%c0_11, %c0_12] : memref<8x128xf32, #tpu.memory_space<vmem>>, vector<8x128xf32>
      tpu.vector_store %arg5[%c0_11, %c0_12], %23 {strides = array<i32>} : memref<8x128xf32, #tpu.memory_space<vmem>>, vector<8x128xf32>,
    } else {
    }
    %c2_i32_2 = arith.constant 2 : i32
    %6 = arith.cmpi slt, %arg1, %c2_i32_2 : i32
    %7 = arith.extui %6 : i1 to i32
    %c0_i32_3 = arith.constant 0 : i32
    %8 = arith.cmpi ne, %7, %c0_i32_3 : i32
    scf.if %8 {
      %c0 = arith.constant 0 : index
      %c0_6 = arith.constant 0 : index
      %12 = vector.load %arg2[%c0, %c0_6] : memref<8x1xf32, #tpu.memory_space<vmem>>, vector<8x1xf32>
      %c0_7 = arith.constant 0 : index
      %c0_8 = arith.constant 0 : index
      %13 = vector.load %arg3[%c0_7, %c0_8] : memref<8x128xf32, #tpu.memory_space<vmem>>, vector<8x128xf32>
      %14 = vector.broadcast %12 : vector<8x1xf32> to vector<8x128xf32>
      %15 = arith.cmpf ogt, %13, %14 : vector<8x128xf32>
      %16 = arith.extui %15 : vector<8x128xi1> to vector<8x128xi32>
      %17 = arith.sitofp %16 : vector<8x128xi32> to vector<8x128xf32>
      %c0_9 = arith.constant 0 : index
      %c0_10 = arith.constant 0 : index
      %18 = vector.load %arg5[%c0_9, %c0_10] : memref<8x128xf32, #tpu.memory_space<vmem>>, vector<8x128xf32>
      %19 = arith.addf %18, %17 : vector<8x128xf32>
      %c0_11 = arith.constant 0 : index
      %c0_12 = arith.constant 0 : index
      %20 = vector.load %arg5[%c0_11, %c0_12] : memref<8x128xf32, #tpu.memory_space<vmem>>, vector<8x128xf32>
      tpu.vector_store %arg5[%c0_11, %c0_12], %19 {strides = array<i32>} : memref<8x128xf32, #tpu.memory_space<vmem>>, vector<8x128xf32>,
    } else {
    }
    %c2_i32_4 = arith.constant 2 : i32
    %9 = arith.cmpi eq, %arg1, %c2_i32_4 : i32
    %10 = arith.extui %9 : i1 to i32
    %c0_i32_5 = arith.constant 0 : i32
    %11 = arith.cmpi ne, %10, %c0_i32_5 : i32
    scf.if %11 {
      %c0 = arith.constant 0 : index
      %c0_6 = arith.constant 0 : index
      %12 = vector.load %arg5[%c0, %c0_6] : memref<8x128xf32, #tpu.memory_space<vmem>>, vector<8x128xf32>
      %cst = arith.constant dense<0.000000e+00> : vector<8xf32>
      %13 = vector.multi_reduction <add>, %12, %cst [1] : vector<8x128xf32> to vector<8xf32>
      %14 = vector.shape_cast %13 : vector<8xf32> to vector<8x1xf32>
      %cst_7 = arith.constant 1.000000e+00 : f32
      %15 = vector.broadcast %cst_7 : f32 to vector<8x1xf32>
      %16 = arith.addf %14, %15 : vector<8x1xf32>
      %cst_8 = arith.constant 1.000000e+00 : f32
      %17 = vector.broadcast %cst_8 : f32 to vector<8x1xf32>
      %18 = arith.divf %17, %16 : vector<8x1xf32>
      %c0_9 = arith.constant 0 : index
      %c0_10 = arith.constant 0 : index
      %19 = vector.load %arg4[%c0_9, %c0_10] : memref<8x1xf32, #tpu.memory_space<vmem>>, vector<8x1xf32>
      tpu.vector_store %arg4[%c0_9, %c0_10], %18 {strides = array<i32>} : memref<8x1xf32, #tpu.memory_space<vmem>>, vector<8x1xf32>,
    } else {
    }
    return
  }
  func.func @transform_0(%arg0: i32, %arg1: i32) -> (i32, i32) {
    %c0_i32 = arith.constant 0 : i32
    %c0_i32_0 = arith.constant 0 : i32
    return %arg0, %c0_i32 : i32, i32
  }
  func.func @transform_1(%arg0: i32, %arg1: i32) -> (i32, i32) {
    %c0_i32 = arith.constant 0 : i32
    return %arg0, %arg1 : i32, i32
  }
  func.func @transform_2(%arg0: i32, %arg1: i32) -> (i32, i32) {
    %c0_i32 = arith.constant 0 : i32
    %c0_i32_0 = arith.constant 0 : i32
    return %arg0, %c0_i32 : i32, i32
  }
}

</mosaic_0001>

<llo_original>
// kernel: tpu_custom_call.1
$region0: #{tpu_custom_call.1}
  #allocation0 [shape = 'u32[]', space=smem, size = 0x4, offset = 0x4, fixed_abs, tag = 'smem constant byte address 0x4 - core index']
  #allocation1 [shape = 'u32[144,128]{1,0:T(1,128)}', space=vmem, size = 0x12000, scoped, tag = 'internal scratch']
  #allocation2 [shape = 'f32[8,128]{1,0:T(8,128)}', space=vmem, size = 0x1000, scoped, tag = 'scratch operand']
  %s0 = inlined_call_operand.vmem [shape: f32[24,1], index: 0, kind: input, shape index: {}]
  %s1 = inlined_call_operand.hbm [shape: f32[24,300], index: 1, kind: input, shape index: {}]
  %s2 = inlined_call_operand.vmem [shape: f32[24,1], index: 2, kind: output, shape index: {}]
  %s3 = sld [smem:[#allocation0]]
  $region61: #{tpu_custom_call.1} parent=0
    _
  %s5 = ssub.s32 1, %s3
  %s6 = scalar_select 0, %s5, %s3
  $region1: #{tpu_custom_call.1} parent=0
    #allocation3 [shape = 'u8[8192]{0}', space=vmem, size = 0x2000, scoped, tag = 'input window, operand 1']
    #allocation4 [shape = 's32[2]{0}', space=sflag, size = 0x8, scoped, tag = 'scoped memory for tpu_custom_call.1']
    %7 = vsyncpa [#allocation4], 0
    %s8 = scalar_lea.sflag [#allocation4], 1
    %9 = vsyncpa %s8, 0
    loop: start=0, step=1, limit=11
    $region2: #{tpu_custom_call.1} parent=1 // loop_pre_header
      _
    $region3: #{tpu_custom_call.1} parent=1 // loop_header
      %s11 = sphi 0, %s15
      %p12 = scmp.ge.s32.totalorder %s11, 11
      %s18 = sphi 0, %s30
      %s19 = sphi 0, %s26
      %s20 = sphi 0, %s18
      %s21 = sphi 0, %s19
      %s22 = sphi 0, %s20
      %s23 = sphi 0, %s21
      %s33 = sphi 0, %s35
      %s36 = sphi 0, %s33
      %s37 = sphi 0, %s36
      %s53 = sphi 0, %s37
      %s61 = sphi 0, %s63
      %s64 = sphi 0, %s61
      %s65 = sphi 0, %s64
      %s81 = sphi 0, %s65
      %s87 = sphi 0, %s89
      %s90 = sphi 0, %s87
      %s91 = sphi 0, %s90
      %s107 = sphi 0, %s91
    $region4: #{tpu_custom_call.1} parent=1 // loop_header_branch
      %14 = sbr.rel (%p12) target = $region8
    $region5: #{tpu_custom_call.1} parent=1 // loop_body
      %s16 = ssub.s32 %s11, 1
      %s17 = ssub.s32 %s11, 2
      %s24 = sadd.s32 1, %s19
      %p25 = scmp.ge.s32.totalorder %s24, 3
      %s26 = scalar_select %p25, 0, %s24
      %s27 = sadd.s32 1, %s18
      %s28 = scalar_select %p25, %s27, %s18
      %p29 = scmp.ge.s32.totalorder %s28, 3
      %s30 = scalar_select %p29, 0, %s28
      %s31 = ssub.s32 %s18, %s30
      %p32 = scmp.eq.s32.totalorder %s31, 0
      %s34 = sadd.s32 %s33, 1
      %s35 = scalar_select %p32, %s33, %s34
      %p38 = pneg %p32
      %p39 = scmp.eq.s32.totalorder %s11, 8
      %p40 = por %p38, %p39
      %p41 = scmp.ne.s32.totalorder %s33, %s36
      %p42 = scmp.eq.s32.totalorder %s11, 0
      %p43 = por %p41, %p42
      %p44 = scmp.ne.s32.totalorder %s33, %s36
      %p45 = scmp.eq.s32.totalorder %s16, 8
      %p46 = por %p44, %p45
      %p47 = scmp.ne.s32.totalorder %s36, %s37
      %p48 = scmp.eq.s32.totalorder %s16, 0
      %p49 = por %p47, %p48
      %p50 = scmp.ne.s32.totalorder %s36, %s37
      %p51 = scmp.eq.s32.totalorder %s17, 8
      %p52 = por %p50, %p51
      %p54 = scmp.ne.s32.totalorder %s37, %s53
      %p55 = scmp.eq.s32.totalorder %s17, 0
      %p56 = por %p54, %p55
      %s57 = ssub.s32 %s18, %s30
      %s58 = ssub.s32 %s19, %s26
      %s59 = sor.u32 %s57, %s58
      %p60 = scmp.eq.s32.totalorder %s59, 0
      %s62 = sadd.s32 %s61, 1
      %s63 = scalar_select %p60, %s61, %s62
      %p66 = pneg %p60
      %p67 = scmp.eq.s32.totalorder %s11, 8
      %p68 = por %p66, %p67
      %p69 = scmp.ne.s32.totalorder %s61, %s64
      %p70 = scmp.eq.s32.totalorder %s11, 0
      %p71 = por %p69, %p70
      %p72 = scmp.ne.s32.totalorder %s61, %s64
      %p73 = scmp.eq.s32.totalorder %s16, 8
      %p74 = por %p72, %p73
      %p75 = scmp.ne.s32.totalorder %s64, %s65
      %p76 = scmp.eq.s32.totalorder %s16, 0
      %p77 = por %p75, %p76
      %p78 = scmp.ne.s32.totalorder %s64, %s65
      %p79 = scmp.eq.s32.totalorder %s17, 8
      %p80 = por %p78, %p79
      %p82 = scmp.ne.s32.totalorder %s65, %s81
      %p83 = scmp.eq.s32.totalorder %s17, 0
      %p84 = por %p82, %p83
      %s85 = ssub.s32 %s18, %s30
      %p86 = scmp.eq.s32.totalorder %s85, 0
      %s88 = sadd.s32 %s87, 1
      %s89 = scalar_select %p86, %s87, %s88
      %p92 = pneg %p86
      %p93 = scmp.eq.s32.totalorder %s11, 8
      %p94 = por %p92, %p93
      %p95 = scmp.ne.s32.totalorder %s87, %s90
      %p96 = scmp.eq.s32.totalorder %s11, 0
      %p97 = por %p95, %p96
      %p98 = scmp.ne.s32.totalorder %s87, %s90
      %p99 = scmp.eq.s32.totalorder %s16, 8
      %p100 = por %p98, %p99
      %p101 = scmp.ne.s32.totalorder %s90, %s91
      %p102 = scmp.eq.s32.totalorder %s16, 0
      %p103 = por %p101, %p102
      %p104 = scmp.ne.s32.totalorder %s90, %s91
      %p105 = scmp.eq.s32.totalorder %s17, 8
      %p106 = por %p104, %p105
      %p108 = scmp.ne.s32.totalorder %s91, %s107
      %p109 = scmp.eq.s32.totalorder %s17, 0
      %p110 = por %p108, %p109
      %p111 = scmp.le.s32.totalorder 1, %s11
      %p112 = scmp.lt.s32.totalorder %s11, 10
      %p113 = pnand %p111, %p112
      %p114 = pneg %p113
      // Predicated region
      $region9: #{tpu_custom_call.1} parent=5 // pred_check
        _
      $region10: #{tpu_custom_call.1} parent=5 // pred_check_branch
        %116 = sbr.rel (%p113) target = $region12
      $region11: #{tpu_custom_call.1} parent=5 // pred_region
        %s117 = ssub.s32 %s11, 1
      $region12: #{tpu_custom_call.1} parent=5 // pred_fallthru
        _
      %p118 = scmp.lt.s32.totalorder %s11, 9
      // Predicated region
      $region13: #{tpu_custom_call.1} parent=5 // pred_check
        %p119 = pneg %p118
      $region14: #{tpu_custom_call.1} parent=5 // pred_check_branch
        %121 = sbr.rel (%p119) target = $region16
      $region15: #{tpu_custom_call.1} parent=5 // pred_region
        // Predicated region
        $region17: #{tpu_custom_call.1} parent=15 // pred_check
          %p122 = pneg %p43
        $region18: #{tpu_custom_call.1} parent=15 // pred_check_branch
          %124 = sbr.rel (%p122) target = $region20
        $region19: #{tpu_custom_call.1} parent=15 // pred_region
          %p125 = scmp.lt.s32.totalorder %s18, 2
          %s126 = scalar_select %p125, %s18, 2
          %s127 = smul.addr %s126, 8
          %s128 = scalar_lea.vmem %s0, %s127
        $region20: #{tpu_custom_call.1} parent=15 // pred_fallthru
          _
        // Predicated region
        $region21: #{tpu_custom_call.1} parent=15 // pred_check
          %p129 = pneg %p71
        $region22: #{tpu_custom_call.1} parent=15 // pred_check_branch
          %131 = sbr.rel (%p129) target = $region24
        $region23: #{tpu_custom_call.1} parent=15 // pred_region
          %s132 = sand.u32 %s61, 1
          %s133 = scalar_lea.sflag [#allocation4], %s132
          %s134 = sand.u32 %s61, 1
          %s135 = smul.addr %s134, 8
          %s136 = scalar_lea.vmem [#allocation3], %s135
          %s138 = ssub.s32 128, 128
          %139 = vsyncadd %s133, %s138
          %s140 = smul.addr %s18, 3
          %s141 = sadd.s32 %s19, %s140
          %s142 = smul.addr %s141, 128
          %s143 = scalar_lea.hbm %s1, %s142
          %s145 = sshll.u32 %s136, 4
          %s146 = int_to_ptr.vmem [resolvable:$true] %s145
          %148 = dma.hbm_to_vmem [thread:$0]  %s143, 128, %s146, %s133
        $region24: #{tpu_custom_call.1} parent=15 // pred_fallthru
          _
      $region16: #{tpu_custom_call.1} parent=5 // pred_fallthru
        _
      %p149 = scmp.le.s32.totalorder 1, %s11
      %p150 = scmp.lt.s32.totalorder %s11, 10
      %p151 = pnand %p149, %p150
      %p152 = pneg %p151
      // Predicated region
      $region25: #{tpu_custom_call.1} parent=5 // pred_check
        _
      $region26: #{tpu_custom_call.1} parent=5 // pred_check_branch
        %154 = sbr.rel (%p151) target = $region28
      $region27: #{tpu_custom_call.1} parent=5 // pred_region
        %s155 = ssub.s32 %s11, 1
        %s156 = sand.u32 %s64, 1
        %s157 = scalar_lea.sflag [#allocation4], %s156
        %s158 = sand.u32 %s64, 1
        %s159 = smul.addr %s158, 8
        %s160 = scalar_lea.vmem [#allocation3], %s159
        // Predicated region
        $region29: #{tpu_custom_call.1} parent=27 // pred_check
          %p161 = pneg %p77
        $region30: #{tpu_custom_call.1} parent=27 // pred_check_branch
          %163 = sbr.rel (%p161) target = $region32
        $region31: #{tpu_custom_call.1} parent=27 // pred_region
          %164 = dma.done %s157, 128
        $region32: #{tpu_custom_call.1} parent=27 // pred_fallthru
          _
        %p165 = scmp.lt.s32.totalorder %s20, 2
        %s166 = scalar_select %p165, %s20, 2
        %s167 = smul.addr %s166, 8
        %s168 = scalar_lea.vmem %s0, %s167
        %p169 = pneg %p49
        %p170 = pneg %p46
        %s171 = sand.u32 %s64, 1
        %s172 = scalar_lea.sflag [#allocation4], %s171
        %s173 = sand.u32 %s64, 1
        %s174 = smul.addr %s173, 8
        %s175 = scalar_lea.vmem [#allocation3], %s174
        %p176 = pneg %p77
        %p177 = pneg %p74
        %p178 = pneg %p103
        %p179 = pneg %p100
        %p180 = scmp.lt.s32.totalorder %s20, 2
        %s181 = scalar_select %p180, %s20, 2
        %s182 = smul.addr %s181, 8
        %s183 = scalar_lea.vmem %s2, %s182
        %p184 = scmp.lt.s32.totalorder %s20, 2
        %s185 = scalar_select %p184, %s20, 2
        %s186 = smul.addr %s185, 8
        %s187 = scalar_lea.vmem %s0, %s186
        %p188 = scmp.lt.s32.totalorder %s20, 2
        %s189 = scalar_select %p188, %s20, 2
        %s190 = smul.addr %s189, 8
        %s191 = scalar_lea.vmem %s2, %s190
        %p192 = scmp.eq.s32.totalorder %s21, 0
        // Predicated region
        $region33: #{tpu_custom_call.1} parent=27 // pred_check
          %p193 = pneg %p192
        $region34: #{tpu_custom_call.1} parent=27 // pred_check_branch
          %195 = sbr.rel (%p193) target = $region36
        $region35: #{tpu_custom_call.1} parent=27 // pred_region
          %196 = vst [vmem:[#allocation2] sm:$0xff] 0.0
        $region36: #{tpu_custom_call.1} parent=27 // pred_fallthru
          _
        %p197 = scmp.eq.s32.totalorder %s21, 2
        // Predicated region
        $region37: #{tpu_custom_call.1} parent=27 // pred_check
          %p198 = pneg %p197
        $region38: #{tpu_custom_call.1} parent=27 // pred_check_branch
          %200 = sbr.rel (%p198) target = $region40
        $region39: #{tpu_custom_call.1} parent=27 // pred_region
          %v201 = vld [vmem:[%s187] sm:$0xff]
          %v202 = vld [vmem:[%s160] sm:$0xff]
          %204 = vset.pattern.permute.xlu0 0
          %205 = vperm.xlu0 %204, %v201
          %v206 = vpop.permute.xlu0 %205
          %vm208 = vcmp.gt.f32.partialorder %v202, %v206
          %v209 = vlaneseq
          %v210 = vand.u32 %v209, 127
          %vm211 = vcmp.lt.s32.totalorder %v210, 44
          %vm212 = vmand %vm208, %vm211
          %v213 = vsel %vm212, 1, 0
          %v214 = vcvt.s32.f32 %v213
          %v215 = vld [vmem:[#allocation2] sm:$0xff]
          %v216 = vadd.f32 %v215, %v214
          %217 = vst [vmem:[#allocation2] sm:$0xff] %v216
        $region40: #{tpu_custom_call.1} parent=27 // pred_fallthru
          _
        %p218 = scmp.lt.s32.totalorder %s21, 2
        // Predicated region
        $region41: #{tpu_custom_call.1} parent=27 // pred_check
          %p219 = pneg %p218
        $region42: #{tpu_custom_call.1} parent=27 // pred_check_branch
          %221 = sbr.rel (%p219) target = $region44
        $region43: #{tpu_custom_call.1} parent=27 // pred_region
          %v222 = vld [vmem:[%s187] sm:$0xff]
          %v223 = vld [vmem:[%s160] sm:$0xff]
          %225 = vset.pattern.permute.xlu0 0
          %226 = vperm.xlu0 %225, %v222
          %v227 = vpop.permute.xlu0 %226
          %vm229 = vcmp.gt.f32.partialorder %v223, %v227
          %v230 = vsel %vm229, 1, 0
          %v231 = vcvt.s32.f32 %v230
          %v232 = vld [vmem:[#allocation2] sm:$0xff]
          %v233 = vadd.f32 %v232, %v231
          %234 = vst [vmem:[#allocation2] sm:$0xff] %v233
        $region44: #{tpu_custom_call.1} parent=27 // pred_fallthru
          _
        // Predicated region
        $region45: #{tpu_custom_call.1} parent=27 // pred_check
          %p235 = pneg %p197
        $region46: #{tpu_custom_call.1} parent=27 // pred_check_branch
          %237 = sbr.rel (%p235) target = $region48
        $region47: #{tpu_custom_call.1} parent=27 // pred_region
          %v238 = vld [vmem:[#allocation2] sm:$0xff]
          %239 = vadd.xlane.f32.xlu0 %v238
          %v240 = vpop.xlane.xlu0 %239
          %v241 = vadd.f32 %v240, 1.0
          %v242 = vrcp.pop %v241
          %v243 = vmul.f32 1.0, %v242
          %vm244 = vcmask 7168
          %245 = vst.msk [vmem:[%s191] sm:$0xff] %vm244, %v243
        $region48: #{tpu_custom_call.1} parent=27 // pred_fallthru
          _
        %p246 = scmp.lt.s32.totalorder %s20, 2
        %s247 = scalar_select %p246, %s20, 2
        %s248 = smul.addr %s247, 8
        %s249 = scalar_lea.vmem %s2, %s248
        // Predicated region
        $region49: #{tpu_custom_call.1} parent=27 // pred_check
          %p250 = pneg %p100
        $region50: #{tpu_custom_call.1} parent=27 // pred_check_branch
          %252 = sbr.rel (%p250) target = $region52
        $region51: #{tpu_custom_call.1} parent=27 // pred_region
          _
        $region52: #{tpu_custom_call.1} parent=27 // pred_fallthru
          _
      $region28: #{tpu_custom_call.1} parent=5 // pred_fallthru
        _
      %p253 = scmp.le.s32.totalorder 2, %s11
      // Predicated region
      $region53: #{tpu_custom_call.1} parent=5 // pred_check
        %p254 = pneg %p253
      $region54: #{tpu_custom_call.1} parent=5 // pred_check_branch
        %256 = sbr.rel (%p254) target = $region56
      $region55: #{tpu_custom_call.1} parent=5 // pred_region
        %s257 = ssub.s32 %s11, 2
        // Predicated region
        $region57: #{tpu_custom_call.1} parent=55 // pred_check
          %p258 = pneg %p106
        $region58: #{tpu_custom_call.1} parent=55 // pred_check_branch
          %260 = sbr.rel (%p258) target = $region60
        $region59: #{tpu_custom_call.1} parent=55 // pred_region
          %p261 = scmp.lt.s32.totalorder %s22, 2
          %s262 = scalar_select %p261, %s22, 2
          %s263 = smul.addr %s262, 8
          %s264 = scalar_lea.vmem %s2, %s263
        $region60: #{tpu_custom_call.1} parent=55 // pred_fallthru
          _
      $region56: #{tpu_custom_call.1} parent=5 // pred_fallthru
        _
    $region6: #{tpu_custom_call.1} parent=1 // loop_footer
      %s15 = sadd.s32 1, %s11
    $region7: #{tpu_custom_call.1} parent=1 // loop_footer_branch
      %10 = sbr.rel target = $region3
    $region8: #{tpu_custom_call.1} parent=1 // loop_exit
      _
    %265 = vsyncpa [#allocation4], 1
    %s266 = scalar_lea.sflag [#allocation4], 1
    %267 = vsyncpa %s266, 1

</llo_original>
